<compile_context>
chip_gen: v5e
topology: v5e:2x2
jax: 0.10.0
libtpu: 0.0.40
codegen_flags: <defaults>
</compile_context>

<pallas_src>
import functools

import jax
import jax.numpy as jnp
from jax.experimental import pallas as pl
from jax.experimental.pallas import tpu as pltpu

LATENT_DIM = 20
HIDDEN = 128
NUM_CLASSES = 5
MAX_TILE_B = 2048      # per-step VMEM (z + out double-buffered + h) ~6 MiB << 16 MiB (v5e default)
MIN_GRID_TILES = 4     # keep >= 4 tiles when possible so v7x megacore has work to split


def _round_up(x, m):
    return pl.cdiv(x, m) * m


def _mlp_kernel(z_ref, w1_ref, b1_ref, w2_ref, b2_ref, out_ref):
    # z_ref:  (TILE_B, LATENT_DIM)   f32
    # w1_ref: (LATENT_DIM, HIDDEN)   f32
    # b1_ref: (1, HIDDEN)            f32
    # w2_ref: (HIDDEN, NUM_CLASSES)  f32
    # b2_ref: (1, NUM_CLASSES)       f32
    # out_ref:(TILE_B, NUM_CLASSES)  f32
    h = jnp.dot(z_ref[...], w1_ref[...],
                preferred_element_type=jnp.float32) + b1_ref[...]
    h = jnp.maximum(h, 0.0)                                   # ReLU on the VPU
    out = jnp.dot(h, w2_ref[...],
                  preferred_element_type=jnp.float32) + b2_ref[...]
    out_ref[...] = out.astype(out_ref.dtype)


@jax.jit
def cnn_classifier_forward(z, w1, b1, w2, b2):
    """Fused forward pass: relu(z @ w1 + b1) @ w2 + b2.

    z:  (batch, LATENT_DIM)
    w1: (LATENT_DIM, HIDDEN)   b1: (1, HIDDEN)
    w2: (HIDDEN, NUM_CLASSES)  b2: (1, NUM_CLASSES)
    returns (batch, NUM_CLASSES) f32 logits.
    """
    batch = z.shape[0]

    # Tile the batch: multiple of 8 (sublane), capped at MAX_TILE_B, and sized
    # to roughly padded_batch/MIN_GRID_TILES so the grid keeps >= 4 tiles when
    # the batch is large enough (v7x megacore sharding).
    batch_8 = int(_round_up(batch, 8))
    tile_b = int(max(8, min(MAX_TILE_B,
                            _round_up(pl.cdiv(batch_8, MIN_GRID_TILES), 8))))
    padded_batch = int(_round_up(batch, tile_b))
    if padded_batch != batch:
        # Ragged tail only; aligned batches take zero extra copies.
        z = jnp.pad(z, ((0, padded_batch - batch), (0, 0)))

    z_f = z.astype(jnp.float32)
    w1_f = w1.astype(jnp.float32)
    b1_f = b1.astype(jnp.float32)
    w2_f = w2.astype(jnp.float32)
    b2_f = b2.astype(jnp.float32)

    grid = (padded_batch // tile_b,)

    flops = 2 * padded_batch * (LATENT_DIM * HIDDEN + HIDDEN * NUM_CLASSES)
    bytes_accessed = (padded_batch * (LATENT_DIM + NUM_CLASSES) * 4
                      + (LATENT_DIM * HIDDEN + HIDDEN + HIDDEN * NUM_CLASSES
                         + NUM_CLASSES) * 4)

    out = pl.pallas_call(
        _mlp_kernel,
        out_shape=jax.ShapeDtypeStruct((padded_batch, NUM_CLASSES), jnp.float32),
        grid_spec=pl.GridSpec(
            grid=grid,
            in_specs=[
                pl.BlockSpec((tile_b, LATENT_DIM), lambda i: (i, 0)),   # z moves with grid
                pl.BlockSpec((LATENT_DIM, HIDDEN), lambda i: (0, 0)),   # weights stay resident
                pl.BlockSpec((1, HIDDEN), lambda i: (0, 0)),
                pl.BlockSpec((HIDDEN, NUM_CLASSES), lambda i: (0, 0)),
                pl.BlockSpec((1, NUM_CLASSES), lambda i: (0, 0)),
            ],
            out_specs=pl.BlockSpec((tile_b, NUM_CLASSES), lambda i: (i, 0)),
        ),
        compiler_params=pltpu.CompilerParams(
            # Independent batch tiles: lets v7x shard across its 2 TensorCores.
            dimension_semantics=("parallel",),
        ),
        cost_estimate=pl.CostEstimate(
            flops=flops, transcendentals=0, bytes_accessed=bytes_accessed),
    )(z_f, w1_f, b1_f, w2_f, b2_f)

    # Strip batch padding only (output is already NUM_CLASSES wide).
    return out[:batch]


def init_params(key):
    """Parameter init mirroring nn.Linear (weights stored transposed as (in, out))."""
    k1, k2, k3, k4 = jax.random.split(key, 4)
    bound1 = 1.0 / jnp.sqrt(LATENT_DIM)
    bound2 = 1.0 / jnp.sqrt(HIDDEN)
    w1 = jax.random.uniform(k1, (LATENT_DIM, HIDDEN), jnp.float32, -bound1, bound1)
    b1 = jax.random.uniform(k2, (1, HIDDEN), jnp.float32, -bound1, bound1)
    w2 = jax.random.uniform(k3, (HIDDEN, NUM_CLASSES), jnp.float32, -bound2, bound2)
    b2 = jax.random.uniform(k4, (1, NUM_CLASSES), jnp.float32, -bound2, bound2)
    return w1, b1, w2, b2


if __name__ == "__main__":
    key = jax.random.PRNGKey(0)
    k_params, k_z = jax.random.split(key)
    w1, b1, w2, b2 = init_params(k_params)

    batch = 8
    z = jax.random.normal(k_z, (batch, LATENT_DIM), jnp.float32)

    out = cnn_classifier_forward(z, w1, b1, w2, b2)
    out = jax.block_until_ready(out)
    assert out.shape == (batch, NUM_CLASSES)

    # Pure-f32 reference (kernel is f32 end-to-end, so tolerance is tight).
    ref = jnp.maximum(z @ w1 + b1, 0.0) @ w2 + b2
    assert jnp.allclose(out, ref, atol=1e-5, rtol=1e-5), (
        float(jnp.max(jnp.abs(out - ref))))

    # Also exercise a ragged / larger batch to hit the multi-tile grid path.
    batch2 = 1000
    z2 = jax.random.normal(jax.random.PRNGKey(1), (batch2, LATENT_DIM), jnp.float32)
    out2 = jax.block_until_ready(cnn_classifier_forward(z2, w1, b1, w2, b2))
    ref2 = jnp.maximum(z2 @ w1 + b1, 0.0) @ w2 + b2
    assert out2.shape == (batch2, NUM_CLASSES)
    assert jnp.allclose(out2, ref2, atol=1e-5, rtol=1e-5), (
        float(jnp.max(jnp.abs(out2 - ref2))))

    print("KERNEL_OK")
</pallas_src>

<mosaic_0001>
module attributes {stable_mosaic.version = 11 : i64} {
  func.func @_mlp_kernel(%arg0: i32, %arg1: memref<8x20xf32, #tpu.memory_space<vmem>>, %arg2: memref<20x128xf32, #tpu.memory_space<vmem>>, %arg3: memref<1x128xf32, #tpu.memory_space<vmem>>, %arg4: memref<128x5xf32, #tpu.memory_space<vmem>>, %arg5: memref<1x5xf32, #tpu.memory_space<vmem>>, %arg6: memref<8x5xf32, #tpu.memory_space<vmem>>) attributes {dimension_semantics = [#tpu.dimension_semantics<parallel>], iteration_bounds = array<i64: 1>, scalar_prefetch = 0 : i64, scratch_operands = 0 : i64, tpu.core_type = #tpu.core_type<tc>, window_params = [{transform_indices = @transform_0, window_bounds = array<i64: 8, 20>}, {pipeline_mode = #tpu.pipeline_mode<synchronous>, transform_indices = @transform_1, window_bounds = array<i64: 20, 128>}, {pipeline_mode = #tpu.pipeline_mode<synchronous>, transform_indices = @transform_2, window_bounds = array<i64: 1, 128>}, {pipeline_mode = #tpu.pipeline_mode<synchronous>, transform_indices = @transform_3, window_bounds = array<i64: 128, 5>}, {pipeline_mode = #tpu.pipeline_mode<synchronous>, transform_indices = @transform_4, window_bounds = array<i64: 1, 5>}, {transform_indices = @transform_5, window_bounds = array<i64: 8, 5>}]} {
    %c0 = arith.constant 0 : index
    %c0_0 = arith.constant 0 : index
    %0 = vector.load %arg1[%c0, %c0_0] : memref<8x20xf32, #tpu.memory_space<vmem>>, vector<8x20xf32>
    %c0_1 = arith.constant 0 : index
    %c0_2 = arith.constant 0 : index
    %1 = vector.load %arg2[%c0_1, %c0_2] : memref<20x128xf32, #tpu.memory_space<vmem>>, vector<20x128xf32>
    %cst = arith.constant dense<0.000000e+00> : vector<8x128xf32>
    %2 = tpu.matmul %0, %1, %cst {dimension_numbers = #tpu.dot_dimension_numbers<[1], [0], [0], [1], [0, 0, 1, 1], [], []>} : vector<8x20xf32>, vector<20x128xf32>, vector<8x128xf32> -> vector<8x128xf32>
    %c0_3 = arith.constant 0 : index
    %c0_4 = arith.constant 0 : index
    %3 = vector.load %arg3[%c0_3, %c0_4] : memref<1x128xf32, #tpu.memory_space<vmem>>, vector<1x128xf32>
    %4 = vector.broadcast %3 : vector<1x128xf32> to vector<8x128xf32>
    %5 = arith.addf %2, %4 : vector<8x128xf32>
    %cst_5 = arith.constant 0.000000e+00 : f32
    %6 = vector.broadcast %cst_5 : f32 to vector<8x128xf32>
    %7 = arith.maximumf %5, %6 : vector<8x128xf32>
    %c0_6 = arith.constant 0 : index
    %c0_7 = arith.constant 0 : index
    %8 = vector.load %arg4[%c0_6, %c0_7] : memref<128x5xf32, #tpu.memory_space<vmem>>, vector<128x5xf32>
    %cst_8 = arith.constant dense<0.000000e+00> : vector<8x5xf32>
    %9 = tpu.matmul %7, %8, %cst_8 {dimension_numbers = #tpu.dot_dimension_numbers<[1], [0], [0], [1], [0, 0, 1, 1], [], []>} : vector<8x128xf32>, vector<128x5xf32>, vector<8x5xf32> -> vector<8x5xf32>
    %c0_9 = arith.constant 0 : index
    %c0_10 = arith.constant 0 : index
    %10 = vector.load %arg5[%c0_9, %c0_10] : memref<1x5xf32, #tpu.memory_space<vmem>>, vector<1x5xf32>
    %11 = vector.broadcast %10 : vector<1x5xf32> to vector<8x5xf32>
    %12 = arith.addf %9, %11 : vector<8x5xf32>
    %c0_11 = arith.constant 0 : index
    %c0_12 = arith.constant 0 : index
    %13 = vector.load %arg6[%c0_11, %c0_12] : memref<8x5xf32, #tpu.memory_space<vmem>>, vector<8x5xf32>
    tpu.vector_store %arg6[%c0_11, %c0_12], %12 {strides = array<i32>} : memref<8x5xf32, #tpu.memory_space<vmem>>, vector<8x5xf32>,
    return
  }
  func.func @transform_0(%arg0: i32) -> (i32, i32) {
    %c0_i32 = arith.constant 0 : i32
    %c0_i32_0 = arith.constant 0 : i32
    return %arg0, %c0_i32 : i32, i32
  }
  func.func @transform_1(%arg0: i32) -> (i32, i32) {
    %c0_i32 = arith.constant 0 : i32
    %c0_i32_0 = arith.constant 0 : i32
    %c0_i32_1 = arith.constant 0 : i32
    return %c0_i32, %c0_i32_0 : i32, i32
  }
  func.func @transform_2(%arg0: i32) -> (i32, i32) {
    %c0_i32 = arith.constant 0 : i32
    %c0_i32_0 = arith.constant 0 : i32
    %c0_i32_1 = arith.constant 0 : i32
    return %c0_i32, %c0_i32_0 : i32, i32
  }
  func.func @transform_3(%arg0: i32) -> (i32, i32) {
    %c0_i32 = arith.constant 0 : i32
    %c0_i32_0 = arith.constant 0 : i32
    %c0_i32_1 = arith.constant 0 : i32
    return %c0_i32, %c0_i32_0 : i32, i32
  }
  func.func @transform_4(%arg0: i32) -> (i32, i32) {
    %c0_i32 = arith.constant 0 : i32
    %c0_i32_0 = arith.constant 0 : i32
    %c0_i32_1 = arith.constant 0 : i32
    return %c0_i32, %c0_i32_0 : i32, i32
  }
  func.func @transform_5(%arg0: i32) -> (i32, i32) {
    %c0_i32 = arith.constant 0 : i32
    %c0_i32_0 = arith.constant 0 : i32
    return %arg0, %c0_i32 : i32, i32
  }
}

</mosaic_0001>

<llo_original>
// kernel: cnn_classifier_forward.1
$region0: #{cnn_classifier_forward.1}
  #allocation0 [shape = 'u32[]', space=smem, size = 0x4, offset = 0x4, fixed_abs, tag = 'smem constant byte address 0x4 - core index']
  #allocation1 [shape = 'u32[72,128]{1,0:T(1,128)}', space=vmem, size = 0x9000, scoped, tag = 'internal scratch']
  %s0 = inlined_call_operand.vmem [shape: f32[8,20], index: 0, kind: input, shape index: {}]
  %s1 = inlined_call_operand.vmem [shape: f32[20,128], index: 1, kind: input, shape index: {}]
  %s2 = inlined_call_operand.vmem [shape: f32[1,128], index: 2, kind: input, shape index: {}]
  %s3 = inlined_call_operand.vmem [shape: f32[128,5], index: 3, kind: input, shape index: {}]
  %s4 = inlined_call_operand.vmem [shape: f32[1,5], index: 4, kind: input, shape index: {}]
  %s5 = inlined_call_operand.hbm [shape: f32[8,5], index: 5, kind: output, shape index: {}]
  %s6 = sld [smem:[#allocation0]]
  $region30: #{cnn_classifier_forward.1} parent=0
    _
  %s8 = ssub.s32 1, %s6
  %s9 = scalar_select 0, %s8, %s6
  $region1: #{cnn_classifier_forward.1} parent=0
    #allocation2 [shape = 'u8[4096]{0}', space=vmem, size = 0x1000, scoped, tag = 'output window, operand 0, single buffered']
    #allocation3 [shape = 's32[1]{0}', space=sflag, size = 0x4, scoped, tag = 'scoped memory for cnn_classifier_forward.1']
    %10 = vsyncpa [#allocation3], 0
    // Predicated region
    $region2: #{cnn_classifier_forward.1} parent=1 // pred_check
      _
    $region3: #{cnn_classifier_forward.1} parent=1 // pred_check_branch
      %12 = sbr.rel (0) target = $region5
    $region4: #{cnn_classifier_forward.1} parent=1 // pred_region
      _
    $region5: #{cnn_classifier_forward.1} parent=1 // pred_fallthru
      _
    // Predicated region
    $region6: #{cnn_classifier_forward.1} parent=1 // pred_check
      _
    $region7: #{cnn_classifier_forward.1} parent=1 // pred_check_branch
      %14 = sbr.rel (0) target = $region9
    $region8: #{cnn_classifier_forward.1} parent=1 // pred_region
      _
    $region9: #{cnn_classifier_forward.1} parent=1 // pred_fallthru
      _
    // Predicated region
    $region10: #{cnn_classifier_forward.1} parent=1 // pred_check
      _
    $region11: #{cnn_classifier_forward.1} parent=1 // pred_check_branch
      %16 = sbr.rel (0) target = $region13
    $region12: #{cnn_classifier_forward.1} parent=1 // pred_region
      _
    $region13: #{cnn_classifier_forward.1} parent=1 // pred_fallthru
      _
    // Predicated region
    $region14: #{cnn_classifier_forward.1} parent=1 // pred_check
      _
    $region15: #{cnn_classifier_forward.1} parent=1 // pred_check_branch
      %18 = sbr.rel (0) target = $region17
    $region16: #{cnn_classifier_forward.1} parent=1 // pred_region
      _
    $region17: #{cnn_classifier_forward.1} parent=1 // pred_fallthru
      _
    // Predicated region
    $region18: #{cnn_classifier_forward.1} parent=1 // pred_check
      _
    $region19: #{cnn_classifier_forward.1} parent=1 // pred_check_branch
      %20 = sbr.rel (0) target = $region21
    $region20: #{cnn_classifier_forward.1} parent=1 // pred_region
      _
    $region21: #{cnn_classifier_forward.1} parent=1 // pred_fallthru
      _
    %v21 = vld [vmem:[%s0] sm:$0xff]
    %v22 = vld [vmem:[%s1] sm:$0xff]
    %v23 = vld [vmem:[%s1 + $0x8] sm:$0xff]
    %v24 = vld [vmem:[%s1 + $0x10] sm:$0xf]
    %v25 = vld [vmem:[%s2] sm:$0x1]
    %v27 = vperm.slane %v25, 0
    %vm29 = vcmask 162816
    %v31 = vsel %vm29, %v21, 0
    %vm33 = vcmask 1043456
    %v35 = vsel %vm33, %v24, 0
    %37 = vmatpush.msra.mxu0 0.0
    %38 = vmatpush.msra.mxu0 0.0
    %39 = vmatpush.msra.mxu0 0.0
    %40 = vmatpush.msra.mxu0 0.0
    %41 = vmatpush.msra.mxu0 0.0
    %42 = vmatpush.msra.mxu0 0.0
    %43 = vmatpush.msra.mxu0 0.0
    %44 = vmatpush.msra.mxu0 0.0
    %45 = vmatpush.msra.mxu0 0.0
    %46 = vmatpush.msra.mxu0 0.0
    %47 = vmatpush.msra.mxu0 0.0
    %48 = vmatpush.msra.mxu0 0.0
    %49 = vmatpush.msra.mxu0 0.0
    %50 = vmatpush.msra.mxu0 %v35
    %51 = vmatpush.msra.mxu0 %v23
    %52 = vmatpush.msra.mxu0 %v22
    %53 = vmatmul.f32.gmra.mxu0 %v31
    %v54 = vpop.f32.mrf.mxu0
    %v55 = vadd.f32 %v27, %v54
    %56 = vdwg.mxu0
    %v57 = vmax.f32 %v55, 0.0
    %v58 = vld [vmem:[%s3] sm:$0xff]
    %v59 = vld [vmem:[%s3 + $0x8] sm:$0xff]
    %v60 = vld [vmem:[%s3 + $0x10] sm:$0xff]
    %v61 = vld [vmem:[%s3 + $0x18] sm:$0xff]
    %v62 = vld [vmem:[%s3 + $0x20] sm:$0xff]
    %v63 = vld [vmem:[%s3 + $0x28] sm:$0xff]
    %v64 = vld [vmem:[%s3 + $0x30] sm:$0xff]
    %v65 = vld [vmem:[%s3 + $0x38] sm:$0xff]
    %v66 = vld [vmem:[%s3 + $0x40] sm:$0xff]
    %v67 = vld [vmem:[%s3 + $0x48] sm:$0xff]
    %v68 = vld [vmem:[%s3 + $0x50] sm:$0xff]
    %v69 = vld [vmem:[%s3 + $0x58] sm:$0xff]
    %v70 = vld [vmem:[%s3 + $0x60] sm:$0xff]
    %v71 = vld [vmem:[%s3 + $0x68] sm:$0xff]
    %v72 = vld [vmem:[%s3 + $0x70] sm:$0xff]
    %v73 = vld [vmem:[%s3 + $0x78] sm:$0xff]
    %v74 = vld [vmem:[%s4] sm:$0x1]
    %v76 = vperm.slane %v74, 0
    %78 = vmatpush.msra.mxu0 %v73
    %79 = vmatpush.msra.mxu0 %v72
    %80 = vmatpush.msra.mxu0 %v71
    %81 = vmatpush.msra.mxu0 %v70
    %82 = vmatpush.msra.mxu0 %v69
    %83 = vmatpush.msra.mxu0 %v68
    %84 = vmatpush.msra.mxu0 %v67
    %85 = vmatpush.msra.mxu0 %v66
    %86 = vmatpush.msra.mxu0 %v65
    %87 = vmatpush.msra.mxu0 %v64
    %88 = vmatpush.msra.mxu0 %v63
    %89 = vmatpush.msra.mxu0 %v62
    %90 = vmatpush.msra.mxu0 %v61
    %91 = vmatpush.msra.mxu0 %v60
    %92 = vmatpush.msra.mxu0 %v59
    %93 = vmatpush.msra.mxu0 %v58
    %94 = vmatmul.f32.gmra.mxu0 %v57
    %v95 = vpop.f32.mrf.mxu0
    %v96 = vadd.f32 %v76, %v95
    %97 = vdwg.mxu0
    %vm98 = vcmask 39936
    %99 = vst.msk [vmem:[#allocation2] sm:$0xff] %vm98, %v96
    // Predicated region
    $region22: #{cnn_classifier_forward.1} parent=1 // pred_check
      _
    $region23: #{cnn_classifier_forward.1} parent=1 // pred_check_branch
      %101 = sbr.rel (0) target = $region25
    $region24: #{cnn_classifier_forward.1} parent=1 // pred_region
      %103 = vsyncadd [#allocation3], 0
      %s105 = sshll.u32 [#allocation2], 4
      %s106 = int_to_ptr.vmem [resolvable:$true] %s105
      %s107 = sshll.u32 %s5, 4
      %s108 = int_to_ptr.hbm [resolvable:$true] %s107
      %110 = dma.vmem_to_hbm [thread:$0]  %s106, 128, %s108, [#allocation3]
    $region25: #{cnn_classifier_forward.1} parent=1 // pred_fallthru
      _
    // Predicated region
    $region26: #{cnn_classifier_forward.1} parent=1 // pred_check
      _
    $region27: #{cnn_classifier_forward.1} parent=1 // pred_check_branch
      %112 = sbr.rel (0) target = $region29
    $region28: #{cnn_classifier_forward.1} parent=1 // pred_region
      %114 = dma.done [#allocation3], 128
    $region29: #{cnn_classifier_forward.1} parent=1 // pred_fallthru
      _
    %115 = vsyncpa [#allocation3], 1

</llo_original>
